<compile_context>
chip_gen: v5e
topology: v5e:2x2
jax: 0.10.0
libtpu: 0.0.40
codegen_flags: <defaults>
</compile_context>

<pallas_src>
import functools

import jax
import jax.numpy as jnp
from jax.experimental import pallas as pl
from jax.experimental.pallas import tpu as pltpu

BN_EPS = 1e-5
LANE = 128            # lane (last-dim) tiling requirement
SUBLANE = 8           # sublane (second-to-last dim) tiling requirement
MAX_BATCH_TILE = 512  # ~85%+ of HBM roofline per measured tiling data


def _round_up(x, m):
    return (x + m - 1) // m * m


def _pow2_floor(x):
    return 1 << (max(int(x), 1).bit_length() - 1)


def _pow2_ceil(x):
    x = max(int(x), 1)
    return 1 << ((x - 1).bit_length())


def _vmem_limit_bytes():
    """Scoped-VMEM limit: 3/4 of physical, capped at 96 MiB.
    -> 96 MiB on v5e/v6e (128 MiB physical), 48 MiB on v7x (64 MiB physical)."""
    try:
        cap = pltpu.get_tpu_info().vmem_capacity_bytes
    except Exception:
        cap = 128 * 1024 * 1024
    return int(min(cap * 3 // 4, 96 * 1024 * 1024))


def _choose_batch_tiles(n, ip, hp, op, itemsize_c, vmem_limit, recompute, max_batch_tile):
    """Per-pass batch tiles.  Powers of two so the two passes' paddings are
    compatible (n is padded to the larger tile, which the smaller divides).

    Resident weights are counted at 2x (Pallas double-buffers inputs even with
    constant index_maps) and the in-kernel f32/bf16 temporaries (h, h_bn,
    h_act) are included in the per-row footprint -- both previously
    unaccounted, which could blow v7x's smaller scoped-VMEM limit."""
    budget = int(vmem_limit * 0.8)
    w1_res = ip * hp * itemsize_c * 2
    w2_res = hp * op * itemsize_c * 2
    vec_res = (2 * hp + op) * 4 * 2 + 4 * hp * 4     # scale/shift/b2 + partial-stat blocks

    stats_res = w1_res + vec_res
    stats_row = 2 * ip * itemsize_c + 2 * hp * 4     # x tile (2 bufs, bf16) + h / masked-h temps
    if not recompute:
        stats_row += 2 * hp * itemsize_c             # spilled bf16 h tile (2 bufs)

    if recompute:
        apply_res = w1_res + w2_res + vec_res
        apply_row = 2 * ip * itemsize_c + 2 * op * 4 + hp * (4 + 4 + itemsize_c)
    else:
        apply_res = w2_res + vec_res
        apply_row = 2 * hp * itemsize_c + 2 * op * 4 + hp * (4 + 4 + itemsize_c)

    cap = min(_pow2_floor(max_batch_tile), MAX_BATCH_TILE, max(_pow2_ceil(n), SUBLANE))

    def pick(res, row):
        avail = max(budget - res, 1 << 20)
        return max(SUBLANE, min(cap, _pow2_floor(avail // row)))

    return pick(stats_res, stats_row), pick(apply_res, apply_row)


# ---------------------------------------------------------------------------
# pass 1: Linear-1 + per-tile partial batch statistics (megacore-parallel)
# ---------------------------------------------------------------------------
def _stats_kernel(x_ref, w1_ref, ssum_ref, ssq_ref, *maybe_h, tm, n_valid, mask_last):
    i = pl.program_id(0)

    # Linear 1 on the MXU (bf16 operands, f32 accumulate).  No +b1: under
    # training-mode BatchNorm the bias is cancelled by the mean subtraction.
    h = jnp.dot(x_ref[...], w1_ref[...], preferred_element_type=jnp.float32)

    if maybe_h:  # spill path: persist h in bf16 (half the old f32 traffic)
        maybe_h[0][...] = h.astype(maybe_h[0].dtype)

    def write_stats(hm):
        ssum_ref[...] = jnp.sum(hm, axis=0, keepdims=True)[None]
        ssq_ref[...] = jnp.sum(hm * h, axis=0, keepdims=True)[None]   # == sum(mask * h^2)

    if mask_last:
        # Only the last tile has zero-padded batch rows; keep the iota/compare/
        # select out of the steady-state tiles.
        last = pl.num_programs(0) - 1

        @pl.when(i == last)
        def _():
            rows = i * tm + jax.lax.broadcasted_iota(jnp.int32, (tm, 1), 0)
            write_stats(jnp.where(rows < n_valid, h, 0.0))

        @pl.when(i != last)
        def _():
            write_stats(h)
    else:
        write_stats(h)


# ---------------------------------------------------------------------------
# pass 2: BatchNorm (precomputed scale/shift) + PReLU + Linear-2
# ---------------------------------------------------------------------------
def _apply_kernel(alpha_ref, xh_ref, *rest, recompute, compute_dtype):
    if recompute:
        w1_ref, scale_ref, shift_ref, w2_ref, b2_ref, o_ref = rest
        # Re-derive h = x @ W1 instead of round-tripping it through HBM.
        h = jnp.dot(xh_ref[...], w1_ref[...], preferred_element_type=jnp.float32)
    else:
        scale_ref, shift_ref, w2_ref, b2_ref, o_ref = rest
        h = xh_ref[...].astype(jnp.float32)          # bf16 spill -> f32

    h_bn = h * scale_ref[...] + shift_ref[...]        # BatchNorm1d (batch stats)
    a = alpha_ref[0]                                  # PReLU single shared slope
    h_act = jnp.where(h_bn >= 0, h_bn, a * h_bn)

    out = jnp.dot(h_act.astype(compute_dtype), w2_ref[...],
                  preferred_element_type=jnp.float32) + b2_ref[...]
    o_ref[...] = out.astype(o_ref.dtype)


# ---------------------------------------------------------------------------
# wrapper
# ---------------------------------------------------------------------------
def mlp_forward(x, params, *, compute_dtype=jnp.bfloat16, max_batch_tile=MAX_BATCH_TILE):
    """x: (N, inp_size) float32. params: dict of kernel parameters."""
    n, inp = x.shape
    hidden = params["w1"].shape[1]
    outp = params["w2"].shape[1]
    f32 = jnp.float32
    itemsize_c = jnp.dtype(compute_dtype).itemsize

    # Lane-dense feature padding (multiples of 128).
    # TODO(synk): on v6e/v7x, rounding large hp/op to 256 further fills the 256x256 MXU.
    ip = _round_up(inp, LANE)
    hp = _round_up(hidden, LANE)
    op = _round_up(outp, LANE)

    # Recompute x@W1 in pass 2 unless the input is much wider than hidden,
    # in which case spill h once in bf16 instead.
    recompute = ip <= 4 * hp

    vmem_limit = _vmem_limit_bytes()
    tm1, tm2 = _choose_batch_tiles(n, ip, hp, op, itemsize_c, vmem_limit,
                                   recompute, max_batch_tile)
    n_pad = _round_up(n, max(tm1, tm2))   # power-of-two tiles: divisible by both
    nt1 = n_pad // tm1
    nt2 = n_pad // tm2
    mask_last = (n_pad != n)

    # Zero-pad operands (zeros are exact no-ops for the matmuls; padded hidden
    # channels yield h == 0 and zero W2 rows, so they never affect real outputs).
    x_p = jnp.zeros((n_pad, ip), compute_dtype).at[:n, :inp].set(x.astype(compute_dtype))
    w1_p = jnp.zeros((ip, hp), compute_dtype).at[:inp, :hidden].set(
        params["w1"].astype(compute_dtype))
    w2_p = jnp.zeros((hp, op), compute_dtype).at[:hidden, :outp].set(
        params["w2"].astype(compute_dtype))
    gamma_p = jnp.ones((1, hp), f32).at[:, :hidden].set(
        params["gamma"].astype(f32).reshape(1, -1))
    beta_p = jnp.zeros((1, hp), f32).at[:, :hidden].set(
        params["beta"].astype(f32).reshape(1, -1))
    b2_p = jnp.zeros((1, op), f32).at[:, :outp].set(
        params["b2"].astype(f32).reshape(1, -1))
    alpha = params["alpha"].astype(f32).reshape(1)

    # ---- pass 1: x @ W1 + per-tile partial sum / sum-of-squares ----
    stats_out_shape = [jax.ShapeDtypeStruct((nt1, 1, hp), f32),
                       jax.ShapeDtypeStruct((nt1, 1, hp), f32)]
    stats_out_specs = [pl.BlockSpec((1, 1, hp), lambda i: (i, 0, 0)),
                       pl.BlockSpec((1, 1, hp), lambda i: (i, 0, 0))]
    stats_bytes = n_pad * ip * itemsize_c + ip * hp * itemsize_c + 2 * nt1 * hp * 4
    if not recompute:
        stats_out_shape.append(jax.ShapeDtypeStruct((n_pad, hp), compute_dtype))
        stats_out_specs.append(pl.BlockSpec((tm1, hp), lambda i: (i, 0)))
        stats_bytes += n_pad * hp * itemsize_c

    stats_results = pl.pallas_call(
        functools.partial(_stats_kernel, tm=tm1, n_valid=n, mask_last=mask_last),
        grid=(nt1,),
        in_specs=[
            pl.BlockSpec((tm1, ip), lambda i: (i, 0)),        # x tile
            pl.BlockSpec((ip, hp), lambda i: (0, 0)),         # W1 VMEM-resident
        ],
        out_specs=tuple(stats_out_specs),
        out_shape=tuple(stats_out_shape),
        compiler_params=pltpu.CompilerParams(
            dimension_semantics=("parallel",),                # per-tile outputs -> megacore-safe
            vmem_limit_bytes=vmem_limit,
        ),
        cost_estimate=pl.CostEstimate(
            flops=2 * n_pad * ip * hp + 4 * n_pad * hp,
            transcendentals=0,
            bytes_accessed=stats_bytes,
        ),
    )(x_p, w1_p)

    if recompute:
        ssum_p, ssq_p = stats_results
        h_spill = None
    else:
        ssum_p, ssq_p, h_spill = stats_results

    # ---- tiny host-of-kernel XLA: reduce partials, fold BN into scale/shift ----
    # TODO(synk): single-pass E[h^2]-mean^2 can lose precision if |mean| >> std.
    inv_n = jnp.float32(1.0 / n)
    mean = jnp.sum(ssum_p, axis=0) * inv_n                    # (1, hp)
    ex2 = jnp.sum(ssq_p, axis=0) * inv_n
    var = jnp.maximum(ex2 - mean * mean, 0.0)
    inv_std = jax.lax.rsqrt(var + BN_EPS)
    scale = gamma_p * inv_std                                 # (1, hp)
    shift = beta_p - mean * scale                             # (1, hp)

    # ---- pass 2: BatchNorm + PReLU + Linear 2 ----
    if recompute:
        inputs = (alpha, x_p, w1_p, scale, shift, w2_p, b2_p)
        in_specs = [
            pl.BlockSpec(memory_space=pltpu.MemorySpace.SMEM),   # PReLU alpha scalar
            pl.BlockSpec((tm2, ip), lambda i: (i, 0)),           # x tile
            pl.BlockSpec((ip, hp), lambda i: (0, 0)),            # W1 VMEM-resident
            pl.BlockSpec((1, hp), lambda i: (0, 0)),             # scale
            pl.BlockSpec((1, hp), lambda i: (0, 0)),             # shift
            pl.BlockSpec((hp, op), lambda i: (0, 0)),            # W2 VMEM-resident
            pl.BlockSpec((1, op), lambda i: (0, 0)),             # b2
        ]
        apply_flops = 2 * n_pad * ip * hp + 2 * n_pad * hp * op + 6 * n_pad * hp
        apply_bytes = (n_pad * ip * itemsize_c + (ip * hp + hp * op) * itemsize_c
                       + n_pad * op * 4 + (2 * hp + op) * 4)
    else:
        inputs = (alpha, h_spill, scale, shift, w2_p, b2_p)
        in_specs = [
            pl.BlockSpec(memory_space=pltpu.MemorySpace.SMEM),
            pl.BlockSpec((tm2, hp), lambda i: (i, 0)),           # spilled h tile (bf16)
            pl.BlockSpec((1, hp), lambda i: (0, 0)),
            pl.BlockSpec((1, hp), lambda i: (0, 0)),
            pl.BlockSpec((hp, op), lambda i: (0, 0)),
            pl.BlockSpec((1, op), lambda i: (0, 0)),
        ]
        apply_flops = 2 * n_pad * hp * op + 6 * n_pad * hp
        apply_bytes = (n_pad * hp * itemsize_c + hp * op * itemsize_c
                       + n_pad * op * 4 + (2 * hp + op) * 4)

    out_pad = pl.pallas_call(
        functools.partial(_apply_kernel, recompute=recompute, compute_dtype=compute_dtype),
        grid=(nt2,),
        in_specs=in_specs,
        out_specs=pl.BlockSpec((tm2, op), lambda i: (i, 0)),
        out_shape=jax.ShapeDtypeStruct((n_pad, op), f32),
        compiler_params=pltpu.CompilerParams(
            dimension_semantics=("parallel",),
            vmem_limit_bytes=vmem_limit,
        ),
        cost_estimate=pl.CostEstimate(
            flops=apply_flops,
            transcendentals=0,
            bytes_accessed=apply_bytes,
        ),
    )(*inputs)

    return out_pad[:n, :outp]


# ---------------------------------------------------------------------------
# params + references
# ---------------------------------------------------------------------------
def init_params(key, inp_size, outp_size, hidden_size):
    k1, k2, k3, k4 = jax.random.split(key, 4)
    s1 = 1.0 / jnp.sqrt(inp_size)
    s2 = 1.0 / jnp.sqrt(hidden_size)
    return {
        # stored as (in, out) == transpose of torch's (out, in)
        "w1": jax.random.uniform(k1, (inp_size, hidden_size), jnp.float32, -s1, s1),
        "b1": jax.random.uniform(k2, (1, hidden_size), jnp.float32, -s1, s1),
        "gamma": jnp.ones((1, hidden_size), jnp.float32),   # BatchNorm1d weight
        "beta": jnp.zeros((1, hidden_size), jnp.float32),   # BatchNorm1d bias
        "alpha": jnp.array([0.25], jnp.float32),             # PReLU default init
        "w2": jax.random.uniform(k3, (hidden_size, outp_size), jnp.float32, -s2, s2),
        "b2": jax.random.uniform(k4, (1, outp_size), jnp.float32, -s2, s2),
    }


def mlp_reference_f32(x, p):
    """Plain-JAX f32 reference mirroring PyTorch semantics (training-mode BN)."""
    h = x @ p["w1"] + p["b1"]
    mean = jnp.mean(h, axis=0, keepdims=True)
    var = jnp.mean((h - mean) ** 2, axis=0, keepdims=True)
    h = (h - mean) / jnp.sqrt(var + BN_EPS) * p["gamma"] + p["beta"]
    h = jnp.where(h >= 0, h, p["alpha"][0] * h)
    return h @ p["w2"] + p["b2"]


def mlp_reference_matched(x, p, compute_dtype=jnp.bfloat16, spill=False):
    """Reference at the kernel's precision (bf16 MXU operands, f32 elsewhere).
    b1 omitted: exactly cancelled by training-mode BatchNorm's mean subtraction."""
    h = jnp.dot(x.astype(compute_dtype), p["w1"].astype(compute_dtype),
                preferred_element_type=jnp.float32)
    mean = jnp.mean(h, axis=0, keepdims=True)
    var = jnp.maximum(jnp.mean(h * h, axis=0, keepdims=True) - mean * mean, 0.0)
    inv_std = jax.lax.rsqrt(var + BN_EPS)
    scale = p["gamma"] * inv_std
    shift = p["beta"] - mean * scale
    h_apply = h.astype(compute_dtype).astype(jnp.float32) if spill else h
    h_bn = h_apply * scale + shift
    h_act = jnp.where(h_bn >= 0, h_bn, p["alpha"][0] * h_bn)
    return jnp.dot(h_act.astype(compute_dtype), p["w2"].astype(compute_dtype),
                   preferred_element_type=jnp.float32) + p["b2"]


if __name__ == "__main__":
    key = jax.random.PRNGKey(0)
    kx, kp, kx2, kp2, kx3, kp3 = jax.random.split(key, 6)

    # Config 1: original toy shapes (single batch tile, recompute path).
    batch, inp_size, hidden_size, outp_size = 8, 16, 32, 8
    x = jax.random.normal(kx, (batch, inp_size), jnp.float32)
    params = init_params(kp, inp_size, outp_size, hidden_size)
    out = jax.block_until_ready(mlp_forward(x, params))
    assert out.shape == (batch, outp_size)
    assert jnp.allclose(out, mlp_reference_matched(x, params), atol=2e-3, rtol=2e-3), \
        "mismatch vs matched-precision reference"
    assert jnp.allclose(out, mlp_reference_f32(x, params), atol=1e-1, rtol=1e-1), \
        "mismatch vs f32 reference (bf16 MXU tolerance)"

    # Config 2: multi-tile batch grid + padded-row masking in the stats pass.
    batch2, inp2, hid2, outp2 = 200, 24, 96, 40
    x2 = jax.random.normal(kx2, (batch2, inp2), jnp.float32)
    params2 = init_params(kp2, inp2, outp2, hid2)
    o2 = jax.block_until_ready(mlp_forward(x2, params2, max_batch_tile=64))
    assert o2.shape == (batch2, outp2)
    assert jnp.allclose(o2, mlp_reference_matched(x2, params2), atol=2e-3, rtol=2e-3), \
        "mismatch vs matched-precision reference (tiled)"

    # Config 3: very wide input / small hidden -> bf16-spill fallback path.
    batch3, inp3, hid3, outp3 = 64, 600, 16, 24
    x3 = jax.random.normal(kx3, (batch3, inp3), jnp.float32)
    params3 = init_params(kp3, inp3, outp3, hid3)
    o3 = jax.block_until_ready(mlp_forward(x3, params3))
    assert o3.shape == (batch3, outp3)
    assert jnp.allclose(o3, mlp_reference_matched(x3, params3, spill=True),
                        atol=5e-3, rtol=5e-3), \
        "mismatch vs matched-precision reference (spill path)"

    print("KERNEL_OK")
</pallas_src>

<mosaic_0001>
module attributes {stable_mosaic.version = 11 : i64} {
  func.func @_stats_kernel(%arg0: i32, %arg1: memref<8x128xbf16, #tpu.memory_space<vmem>>, %arg2: memref<128x128xbf16, #tpu.memory_space<vmem>>, %arg3: memref<1x1x128xf32, #tpu.memory_space<vmem>>, %arg4: memref<1x1x128xf32, #tpu.memory_space<vmem>>) attributes {dimension_semantics = [#tpu.dimension_semantics<parallel>], iteration_bounds = array<i64: 1>, scalar_prefetch = 0 : i64, scratch_operands = 0 : i64, tpu.core_type = #tpu.core_type<tc>, window_params = [{transform_indices = @transform_0, window_bounds = array<i64: 8, 128>}, {pipeline_mode = #tpu.pipeline_mode<synchronous>, transform_indices = @transform_1, window_bounds = array<i64: 128, 128>}, {transform_indices = @transform_2, window_bounds = array<i64: 1, 1, 128>}, {transform_indices = @transform_3, window_bounds = array<i64: 1, 1, 128>}]} {
    %c0 = arith.constant 0 : index
    %c0_0 = arith.constant 0 : index
    %0 = vector.load %arg1[%c0, %c0_0] : memref<8x128xbf16, #tpu.memory_space<vmem>>, vector<8x128xbf16>
    %c0_1 = arith.constant 0 : index
    %c0_2 = arith.constant 0 : index
    %1 = vector.load %arg2[%c0_1, %c0_2] : memref<128x128xbf16, #tpu.memory_space<vmem>>, vector<128x128xbf16>
    %cst = arith.constant dense<0.000000e+00> : vector<8x128xf32>
    %2 = tpu.matmul %0, %1, %cst {dimension_numbers = #tpu.dot_dimension_numbers<[1], [0], [0], [1], [0, 0, 1, 1], [], []>} : vector<8x128xbf16>, vector<128x128xbf16>, vector<8x128xf32> -> vector<8x128xf32>
    %cst_3 = arith.constant dense<0.000000e+00> : vector<128xf32>
    %3 = vector.multi_reduction <add>, %2, %cst_3 [0] : vector<8x128xf32> to vector<128xf32>
    %4 = vector.shape_cast %3 : vector<128xf32> to vector<1x128xf32>
    %5 = vector.shape_cast %4 : vector<1x128xf32> to vector<1x1x128xf32>
    %c0_4 = arith.constant 0 : index
    %c0_5 = arith.constant 0 : index
    %c0_6 = arith.constant 0 : index
    %6 = vector.load %arg3[%c0_4, %c0_5, %c0_6] : memref<1x1x128xf32, #tpu.memory_space<vmem>>, vector<1x1x128xf32>
    tpu.vector_store %arg3[%c0_4, %c0_5, %c0_6], %5 {strides = array<i32>} : memref<1x1x128xf32, #tpu.memory_space<vmem>>, vector<1x1x128xf32>,
    %7 = arith.mulf %2, %2 : vector<8x128xf32>
    %cst_7 = arith.constant dense<0.000000e+00> : vector<128xf32>
    %8 = vector.multi_reduction <add>, %7, %cst_7 [0] : vector<8x128xf32> to vector<128xf32>
    %9 = vector.shape_cast %8 : vector<128xf32> to vector<1x128xf32>
    %10 = vector.shape_cast %9 : vector<1x128xf32> to vector<1x1x128xf32>
    %c0_8 = arith.constant 0 : index
    %c0_9 = arith.constant 0 : index
    %c0_10 = arith.constant 0 : index
    %11 = vector.load %arg4[%c0_8, %c0_9, %c0_10] : memref<1x1x128xf32, #tpu.memory_space<vmem>>, vector<1x1x128xf32>
    tpu.vector_store %arg4[%c0_8, %c0_9, %c0_10], %10 {strides = array<i32>} : memref<1x1x128xf32, #tpu.memory_space<vmem>>, vector<1x1x128xf32>,
    return
  }
  func.func @transform_0(%arg0: i32) -> (i32, i32) {
    %c0_i32 = arith.constant 0 : i32
    %c0_i32_0 = arith.constant 0 : i32
    return %arg0, %c0_i32 : i32, i32
  }
  func.func @transform_1(%arg0: i32) -> (i32, i32) {
    %c0_i32 = arith.constant 0 : i32
    %c0_i32_0 = arith.constant 0 : i32
    %c0_i32_1 = arith.constant 0 : i32
    return %c0_i32, %c0_i32_0 : i32, i32
  }
  func.func @transform_2(%arg0: i32) -> (i32, i32, i32) {
    %c0_i32 = arith.constant 0 : i32
    %c0_i32_0 = arith.constant 0 : i32
    %c0_i32_1 = arith.constant 0 : i32
    return %arg0, %c0_i32, %c0_i32_0 : i32, i32, i32
  }
  func.func @transform_3(%arg0: i32) -> (i32, i32, i32) {
    %c0_i32 = arith.constant 0 : i32
    %c0_i32_0 = arith.constant 0 : i32
    %c0_i32_1 = arith.constant 0 : i32
    return %arg0, %c0_i32, %c0_i32_0 : i32, i32, i32
  }
}

</mosaic_0001>

<llo_original>
// kernel: tpu_custom_call.1
$region0: #{tpu_custom_call.1}
  #allocation0 [shape = 'u32[]', space=smem, size = 0x4, offset = 0x4, fixed_abs, tag = 'smem constant byte address 0x4 - core index']
  #allocation1 [shape = 'u32[72,128]{1,0:T(1,128)}', space=vmem, size = 0x9000, scoped, tag = 'internal scratch']
  %s0 = inlined_call_operand.hbm [shape: bf16[8,128], index: 0, kind: input, shape index: {}]
  %s1 = inlined_call_operand.hbm [shape: bf16[128,128], index: 1, kind: input, shape index: {}]
  %s2 = inlined_call_operand.hbm [shape: f32[1,1,128], index: 2, kind: output, shape index: {0}]
  %s3 = inlined_call_operand.hbm [shape: f32[1,1,128], index: 3, kind: output, shape index: {1}]
  %4 = xla_tuple %s2, %s3
  %s5 = sld [smem:[#allocation0]]
  $region34: #{tpu_custom_call.1} parent=0
    _
  %s7 = ssub.s32 1, %s5
  %s8 = scalar_select 0, %s7, %s5
  $region1: #{tpu_custom_call.1} parent=0
    #allocation2 [shape = 'u8[2048]{0}', space=vmem, size = 0x800, scoped, tag = 'input window, operand 0, single buffered']
    #allocation3 [shape = 's32[1]{0}', space=sflag, size = 0x4, scoped, tag = 'scoped memory for tpu_custom_call.1']
    #allocation4 [shape = 's32[1]{0}', space=sflag, size = 0x4, scoped, tag = 'scoped memory for tpu_custom_call.1']
    #allocation5 [shape = 'u8[32768]{0}', space=vmem, size = 0x8000, scoped, tag = 'input window, operand 1, single buffered']
    #allocation6 [shape = 's32[1]{0}', space=sflag, size = 0x4, scoped, tag = 'scoped memory for tpu_custom_call.1']
    #allocation7 [shape = 'u8[512]{0}', space=vmem, size = 0x400, scoped, tag = 'output window, operand 0, single buffered']
    #allocation8 [shape = 'u8[512]{0}', space=vmem, size = 0x400, scoped, tag = 'output window, operand 1, single buffered']
    #allocation9 [shape = 's32[1]{0}', space=sflag, size = 0x4, scoped, tag = 'scoped memory for tpu_custom_call.1']
    %9 = vsyncpa [#allocation3], 0
    %10 = vsyncpa [#allocation6], 0
    %11 = vsyncpa [#allocation4], 0
    %12 = vsyncpa [#allocation9], 0
    // Predicated region
    $region2: #{tpu_custom_call.1} parent=1 // pred_check
      _
    $region3: #{tpu_custom_call.1} parent=1 // pred_check_branch
      %14 = sbr.rel (0) target = $region5
    $region4: #{tpu_custom_call.1} parent=1 // pred_region
      %16 = vsyncadd [#allocation3], 0
      %s18 = sshll.u32 %s0, 4
      %s19 = int_to_ptr.hbm [resolvable:$true] %s18
      %s20 = sshll.u32 [#allocation2], 4
      %s21 = int_to_ptr.vmem [resolvable:$true] %s20
      %23 = dma.hbm_to_vmem [thread:$0]  %s19, 64, %s21, [#allocation3]
    $region5: #{tpu_custom_call.1} parent=1 // pred_fallthru
      _
    // Predicated region
    $region6: #{tpu_custom_call.1} parent=1 // pred_check
      _
    $region7: #{tpu_custom_call.1} parent=1 // pred_check_branch
      %25 = sbr.rel (0) target = $region9
    $region8: #{tpu_custom_call.1} parent=1 // pred_region
      %27 = vsyncadd [#allocation6], 0
      %s28 = sshll.u32 %s1, 4
      %s29 = int_to_ptr.hbm [resolvable:$true] %s28
      %s30 = sshll.u32 [#allocation5], 4
      %s31 = int_to_ptr.vmem [resolvable:$true] %s30
      %36 = dma.hbm_to_vmem [thread:$0]  %s29, 1024, %s31, [#allocation6], 64, 64, 4
    $region9: #{tpu_custom_call.1} parent=1 // pred_fallthru
      _
    // Predicated region
    $region10: #{tpu_custom_call.1} parent=1 // pred_check
      _
    $region11: #{tpu_custom_call.1} parent=1 // pred_check_branch
      %38 = sbr.rel (0) target = $region13
    $region12: #{tpu_custom_call.1} parent=1 // pred_region
      %40 = dma.done [#allocation3], 64
    $region13: #{tpu_custom_call.1} parent=1 // pred_fallthru
      _
    // Predicated region
    $region14: #{tpu_custom_call.1} parent=1 // pred_check
      _
    $region15: #{tpu_custom_call.1} parent=1 // pred_check_branch
      %42 = sbr.rel (0) target = $region17
    $region16: #{tpu_custom_call.1} parent=1 // pred_region
      %44 = dma.done [#allocation6], 1024
    $region17: #{tpu_custom_call.1} parent=1 // pred_fallthru
      _
    %v45 = vld [vmem:[#allocation2] sm:$0xf]
    %v46 = vld [vmem:[#allocation5] sm:$0xf]
    %v47 = vld [vmem:[#allocation5 + $0x4] sm:$0xf]
    %v48 = vld [vmem:[#allocation5 + $0x8] sm:$0xf]
    %v49 = vld [vmem:[#allocation5 + $0xc] sm:$0xf]
    %v50 = vld [vmem:[#allocation5 + $0x10] sm:$0xf]
    %v51 = vld [vmem:[#allocation5 + $0x14] sm:$0xf]
    %v52 = vld [vmem:[#allocation5 + $0x18] sm:$0xf]
    %v53 = vld [vmem:[#allocation5 + $0x1c] sm:$0xf]
    %v54 = vld [vmem:[#allocation5 + $0x20] sm:$0xf]
    %v55 = vld [vmem:[#allocation5 + $0x24] sm:$0xf]
    %v56 = vld [vmem:[#allocation5 + $0x28] sm:$0xf]
    %v57 = vld [vmem:[#allocation5 + $0x2c] sm:$0xf]
    %v58 = vld [vmem:[#allocation5 + $0x30] sm:$0xf]
    %v59 = vld [vmem:[#allocation5 + $0x34] sm:$0xf]
    %v60 = vld [vmem:[#allocation5 + $0x38] sm:$0xf]
    %v61 = vld [vmem:[#allocation5 + $0x3c] sm:$0xf]
    %v78 = vunpack.c.l.b16 %v46
    %v79 = vunpack.c.l.b16 %v47
    %v80 = vunpack.c.l.b16 %v48
    %v81 = vunpack.c.l.b16 %v49
    %v82 = vunpack.c.l.b16 %v50
    %v83 = vunpack.c.l.b16 %v51
    %v84 = vunpack.c.l.b16 %v52
    %v85 = vunpack.c.l.b16 %v53
    %v86 = vunpack.c.l.b16 %v54
    %v87 = vunpack.c.l.b16 %v55
    %v88 = vunpack.c.l.b16 %v56
    %v89 = vunpack.c.l.b16 %v57
    %v90 = vunpack.c.l.b16 %v58
    %v91 = vunpack.c.l.b16 %v59
    %v92 = vunpack.c.l.b16 %v60
    %v93 = vunpack.c.l.b16 %v61
    %v94 = vpack.c.b16 %v79, %v78
    %v95 = vpack.c.b16 %v81, %v80
    %v96 = vpack.c.b16 %v83, %v82
    %v97 = vpack.c.b16 %v85, %v84
    %v98 = vpack.c.b16 %v87, %v86
    %v99 = vpack.c.b16 %v89, %v88
    %v100 = vpack.c.b16 %v91, %v90
    %v101 = vpack.c.b16 %v93, %v92
    %110 = vmatpush.bf16.msra.mxu0 %v101
    %111 = vmatpush.bf16.msra.mxu0 %v100
    %112 = vmatpush.bf16.msra.mxu0 %v99
    %113 = vmatpush.bf16.msra.mxu0 %v98
    %114 = vmatpush.bf16.msra.mxu0 %v97
    %115 = vmatpush.bf16.msra.mxu0 %v96
    %116 = vmatpush.bf16.msra.mxu0 %v95
    %117 = vmatpush.bf16.msra.mxu0 %v94
    %118 = vmatmul.bf16.gmra.mxu0 %v45
    %v119 = vpop.f32.mrf.mxu0
    %v120 = vadd.f32 0.0, %v119
    %v121 = vpop.f32.mrf.mxu0
    %122 = vdwg.mxu0
    %v123 = vrot.slane %v120, 4
    %v124 = vadd.f32 %v120, %v123
    %v125 = vrot.slane %v124, 2
    %v126 = vadd.f32 %v124, %v125
    %v127 = vrot.slane %v126, 1
    %v128 = vadd.f32 %v126, %v127
    %129 = vst [vmem:[#allocation7] sm:$0x1] %v128
    %v130 = vmul.f32 %v120, %v120
    %v131 = vrot.slane %v130, 4
    %v132 = vadd.f32 %v130, %v131
    %v133 = vrot.slane %v132, 2
    %v134 = vadd.f32 %v132, %v133
    %v135 = vrot.slane %v134, 1
    %v136 = vadd.f32 %v134, %v135
    %137 = vst [vmem:[#allocation8] sm:$0x1] %v136
    // Predicated region
    $region18: #{tpu_custom_call.1} parent=1 // pred_check
      _
    $region19: #{tpu_custom_call.1} parent=1 // pred_check_branch
      %139 = sbr.rel (0) target = $region21
    $region20: #{tpu_custom_call.1} parent=1 // pred_region
      %141 = vsyncadd [#allocation4], 0
      %s143 = sshll.u32 [#allocation7], 4
      %s144 = int_to_ptr.vmem [resolvable:$true] %s143
      %s145 = sshll.u32 %s2, 4
      %s146 = int_to_ptr.hbm [resolvable:$true] %s145
      %148 = dma.vmem_to_hbm [thread:$0]  %s144, 16, %s146, [#allocation4]
    $region21: #{tpu_custom_call.1} parent=1 // pred_fallthru
      _
    // Predicated region
    $region22: #{tpu_custom_call.1} parent=1 // pred_check
      _
    $region23: #{tpu_custom_call.1} parent=1 // pred_check_branch
      %150 = sbr.rel (0) target = $region25
    $region24: #{tpu_custom_call.1} parent=1 // pred_region
      %152 = vsyncadd [#allocation9], 0
      %s154 = sshll.u32 [#allocation8], 4
      %s155 = int_to_ptr.vmem [resolvable:$true] %s154
      %s156 = sshll.u32 %s3, 4
      %s157 = int_to_ptr.hbm [resolvable:$true] %s156
      %159 = dma.vmem_to_hbm [thread:$0]  %s155, 16, %s157, [#allocation9]
    $region25: #{tpu_custom_call.1} parent=1 // pred_fallthru
      _
    // Predicated region
    $region26: #{tpu_custom_call.1} parent=1 // pred_check
      _
    $region27: #{tpu_custom_call.1} parent=1 // pred_check_branch
      %161 = sbr.rel (0) target = $region29
    $region28: #{tpu_custom_call.1} parent=1 // pred_region
      %163 = dma.done [#allocation4], 16
    $region29: #{tpu_custom_call.1} parent=1 // pred_fallthru
      _
    // Predicated region
    $region30: #{tpu_custom_call.1} parent=1 // pred_check
      _
    $region31: #{tpu_custom_call.1} parent=1 // pred_check_branch
      %165 = sbr.rel (0) target = $region33
    $region32: #{tpu_custom_call.1} parent=1 // pred_region
      %167 = dma.done [#allocation9], 16
    $region33: #{tpu_custom_call.1} parent=1 // pred_fallthru
      _
    %168 = vsyncpa [#allocation3], 1
    %169 = vsyncpa [#allocation6], 1
    %170 = vsyncpa [#allocation4], 1
    %171 = vsyncpa [#allocation9], 1

</llo_original>
